<compile_context>
chip_gen: v7x
topology: tpu7x:2x2x1
jax: 0.10.0
libtpu: 0.0.40
codegen_flags: <defaults>
</compile_context>

<pallas_src>
import functools

import jax
import jax.numpy as jnp
from jax.experimental import pallas as pl
from jax.experimental.pallas import tpu as pltpu


# ----------------------------- helpers ------------------------------------------------


def _round_up(n, m):
    return ((n + m - 1) // m) * m


def _pad2(a, rows, cols):
    return jnp.pad(a, ((0, rows - a.shape[0]), (0, cols - a.shape[1])))


# ----------------------------- kernel -------------------------------------------------


def vae_kernel(x_ref, eps_ref,
               w1_ref, b1_ref,
               w_enc_ref, b_enc_ref,
               w3_ref, b3_ref,
               w4_ref, b4_ref,
               recon_ref, enc_ref):
    """One batch tile of the full VAE forward. All refs live in VMEM."""
    compute_dtype = x_ref.dtype
    lat_pad = w3_ref.shape[0]          # static: padded latent width (mu | logvar split)

    x = x_ref[...]                     # [TB, H_pad]  (compute dtype, e.g. bf16)
    eps = eps_ref[...]                 # [TB, L_pad]  f32

    # ---- encode ----
    h1 = jnp.dot(x, w1_ref[...], preferred_element_type=jnp.float32) + b1_ref[...]
    h1 = jnp.maximum(h1, 0.0)          # ReLU (f32, VPU)

    # Fused mu|logvar head: single MXU pass, lane-dense [TB, 2*L_pad] result.
    enc = (jnp.dot(h1.astype(compute_dtype), w_enc_ref[...],
                   preferred_element_type=jnp.float32)
           + b_enc_ref[...])
    # Store the encoder slab immediately (ends its live range early; the writeback can
    # overlap the decode matmuls instead of queuing at kernel end).
    enc_ref[...] = enc.astype(enc_ref.dtype)

    mu = enc[:, :lat_pad]
    logvar = enc[:, lat_pad:]

    # ---- reparameterize ----
    std = jnp.exp(0.5 * logvar)        # EUP
    z = mu + eps * std

    # ---- decode ----
    h3 = jnp.dot(z.astype(compute_dtype), w3_ref[...],
                 preferred_element_type=jnp.float32) + b3_ref[...]
    h3 = jnp.maximum(h3, 0.0)          # ReLU
    logits = jnp.dot(h3.astype(compute_dtype), w4_ref[...],
                     preferred_element_type=jnp.float32) + b4_ref[...]
    # sigmoid = 1 / (1 + exp(-x)): exp (EUP) + approximate reciprocal (EUP).
    # Clamp so exp(-logits) stays finite even for strongly negative logits.
    logits = jnp.maximum(logits, -60.0)
    recon = pl.reciprocal(1.0 + jnp.exp(-logits), approx=True)

    recon_ref[...] = recon.astype(recon_ref.dtype)      # lane-dense [TB, H_pad]


# ----------------------------- weight preparation (one-time) --------------------------


def prepare_params(params, compute_dtype=jnp.bfloat16):
    """Pad / fuse / cast weights ONCE (hoisted out of the per-call path).

    Returns a pytree of padded operands:
      w1 [H_p, Li_p] bf16, b1 [1, Li_p] f32,
      w_enc [Li_p, 2*L_p] bf16 (mu|logvar fused), b_enc [1, 2*L_p] f32,
      w3 [L_p, Li_p] bf16, b3 [1, Li_p] f32,
      w4 [Li_p, H_p] bf16, b4 [1, H_p] f32.
    """
    hidden, lat_int = params["w1"].shape
    lat = params["w21"].shape[1]

    h_p = _round_up(hidden, 128)
    li_p = _round_up(lat_int, 128)
    l_p = _round_up(lat, 128)

    prep = {
        "w1": _pad2(params["w1"], h_p, li_p).astype(compute_dtype),
        "b1": _pad2(params["b1"], 1, li_p),
        # fused encoder head: columns [0, l_p) = mu, [l_p, 2*l_p) = logvar
        "w_enc": jnp.concatenate(
            [_pad2(params["w21"], li_p, l_p), _pad2(params["w22"], li_p, l_p)],
            axis=1).astype(compute_dtype),
        "b_enc": jnp.concatenate(
            [_pad2(params["b21"], 1, l_p), _pad2(params["b22"], 1, l_p)], axis=1),
        "w3": _pad2(params["w3"], l_p, li_p).astype(compute_dtype),
        "b3": _pad2(params["b3"], 1, li_p),
        "w4": _pad2(params["w4"], li_p, h_p).astype(compute_dtype),
        "b4": _pad2(params["b4"], 1, h_p),
    }
    return prep


# ----------------------------- forward (per-call, jitted) -----------------------------


@functools.partial(jax.jit, static_argnames=("compute_dtype", "recon_dtype"))
def vae_forward(x, eps, prep, compute_dtype=jnp.bfloat16, recon_dtype=jnp.float32):
    """Full VAE forward in a single Pallas kernel.

    Args:
      x:    [B, hidden] f32 input.
      eps:  [B, lat]    f32 standard-normal noise (reparameterization).
      prep: pytree from prepare_params() (padded / fused / pre-cast weights).
    Returns:
      (recon [B, hidden], mu [B, lat], logvar [B, lat]); mu/logvar f32,
      recon in `recon_dtype`.
    """
    B, hidden = x.shape
    lat = eps.shape[1]
    h_p, li_p = prep["w1"].shape
    l_p = prep["w3"].shape[0]

    # Batch tiling: up to 512 rows per tile (fills the 256-row MXU on v6e/v7x and
    # amortizes per-grid-step overhead); whenever the aligned batch allows, produce at
    # least 2 tiles so the "parallel" grid axis can be split across v7x's 2 TensorCores.
    b_al = _round_up(B, 8)
    if b_al >= 16:
        tile_b = min(512, _round_up(b_al // 2, 8))
    else:
        tile_b = b_al
    b_p = _round_up(b_al, tile_b)
    n_tiles = b_p // tile_b

    # Per-call activation padding only (weights already prepared once).
    x_p = _pad2(x, b_p, h_p).astype(compute_dtype)
    eps_p = _pad2(eps, b_p, l_p)                               # f32

    inputs = (x_p, eps_p,
              prep["w1"], prep["b1"],
              prep["w_enc"], prep["b_enc"],
              prep["w3"], prep["b3"],
              prep["w4"], prep["b4"])

    # Per-batch-tile blocks for activations; weights map to block (0,0) every step so
    # they stay VMEM-resident across the (parallel) batch grid.
    def batch_map(i):
        return (i, 0)

    def const_map(i):
        return (0, 0)

    in_specs = [
        pl.BlockSpec((tile_b, h_p), batch_map),          # x
        pl.BlockSpec((tile_b, l_p), batch_map),          # eps
        pl.BlockSpec((h_p, li_p), const_map),            # w1
        pl.BlockSpec((1, li_p), const_map),              # b1
        pl.BlockSpec((li_p, 2 * l_p), const_map),        # w_enc (mu|logvar fused)
        pl.BlockSpec((1, 2 * l_p), const_map),           # b_enc
        pl.BlockSpec((l_p, li_p), const_map),            # w3
        pl.BlockSpec((1, li_p), const_map),               # b3
        pl.BlockSpec((li_p, h_p), const_map),             # w4
        pl.BlockSpec((1, h_p), const_map),                # b4
    ]
    out_specs = (
        pl.BlockSpec((tile_b, h_p), batch_map),          # recon slab
        pl.BlockSpec((tile_b, 2 * l_p), batch_map),      # enc slab (mu|logvar)
    )
    out_shapes = (
        jax.ShapeDtypeStruct((b_p, h_p), recon_dtype),
        jax.ShapeDtypeStruct((b_p, 2 * l_p), jnp.float32),
    )

    flops = 2 * b_p * (h_p * li_p + li_p * 2 * l_p + l_p * li_p + li_p * h_p)
    bytes_accessed = (sum(int(a.size) * a.dtype.itemsize for a in inputs)
                      + sum(int(s.size) * s.dtype.itemsize for s in out_shapes))
    transcendentals = b_p * (l_p + 2 * h_p)              # exp(std), exp + recip (sigmoid)

    recon_p, enc_p = pl.pallas_call(
        vae_kernel,
        out_shape=out_shapes,
        grid=(n_tiles,),
        in_specs=in_specs,
        out_specs=out_specs,
        compiler_params=pltpu.CompilerParams(
            dimension_semantics=("parallel",)),
        cost_estimate=pl.CostEstimate(
            flops=flops, transcendentals=transcendentals,
            bytes_accessed=bytes_accessed),
    )(*inputs)

    recon = recon_p[:B, :hidden]
    mu = enc_p[:B, :lat]
    logvar = enc_p[:B, l_p:l_p + lat]
    return recon, mu, logvar


# ----------------------------- params / reference -------------------------------------


def init_params(key, hidden_size, lat_int_size, lat_size):
    """Deterministic synthetic init. Weights [in, out], biases [1, out] (f32)."""
    keys = jax.random.split(key, 10)

    def lin(kw, kb, fan_in, fan_out):
        w = jax.random.normal(kw, (fan_in, fan_out), jnp.float32) * 0.1
        b = jax.random.normal(kb, (1, fan_out), jnp.float32) * 0.1
        return w, b

    w1, b1 = lin(keys[0], keys[1], hidden_size, lat_int_size)
    w21, b21 = lin(keys[2], keys[3], lat_int_size, lat_size)
    w22, b22 = lin(keys[4], keys[5], lat_int_size, lat_size)
    w3, b3 = lin(keys[6], keys[7], lat_size, lat_int_size)
    w4, b4 = lin(keys[8], keys[9], lat_int_size, hidden_size)
    return {"w1": w1, "b1": b1, "w21": w21, "b21": b21, "w22": w22, "b22": b22,
            "w3": w3, "b3": b3, "w4": w4, "b4": b4}


def vae_forward_ref(x, eps, p, compute_dtype=jnp.bfloat16):
    """Pure-JAX reference with the same cast/accumulation scheme as the kernel."""
    cd = compute_dtype

    def mm(a, w):
        return jnp.dot(a.astype(cd), w.astype(cd), preferred_element_type=jnp.float32)

    h1 = jax.nn.relu(mm(x, p["w1"]) + p["b1"])
    mu = mm(h1, p["w21"]) + p["b21"]
    logvar = mm(h1, p["w22"]) + p["b22"]
    z = mu + eps * jnp.exp(0.5 * logvar)
    h3 = jax.nn.relu(mm(z, p["w3"]) + p["b3"])
    recon = jax.nn.sigmoid(mm(h3, p["w4"]) + p["b4"])
    return recon, mu, logvar


# ----------------------------- main ----------------------------------------------------


if __name__ == "__main__":
    # Small shapes consistent with the module structure:
    # hidden -> lat_int -> lat (encoder) and back (decoder).
    batch = 2
    hidden_size = 32
    lat_int_size = 16
    lat_size = 8

    key = jax.random.PRNGKey(0)
    k_params, k_x, k_eps = jax.random.split(key, 3)

    params = init_params(k_params, hidden_size, lat_int_size, lat_size)
    x = jax.random.normal(k_x, (batch, hidden_size), jnp.float32)
    # Reparameterization noise (torch.randn_like(std)) generated deterministically here.
    eps = jax.random.normal(k_eps, (batch, lat_size), jnp.float32)

    # One-time weight preparation (padding / mu|logvar fusion / bf16 cast), hoisted out
    # of the per-call path.
    prep = jax.tree_util.tree_map(jax.block_until_ready, prepare_params(params))

    recon, mu, logvar = vae_forward(x, eps, prep)
    jax.block_until_ready((recon, mu, logvar))

    # Cross-check against a pure-JAX reference using the same bf16-cast operands.
    r_ref, mu_ref, lv_ref = vae_forward_ref(x, eps, params)
    assert jnp.allclose(mu, mu_ref, atol=1e-3), "mu mismatch"
    assert jnp.allclose(logvar, lv_ref, atol=1e-3), "logvar mismatch"
    # recon tolerance is looser: kernel uses EUP approximate reciprocal for the sigmoid.
    assert jnp.allclose(recon, r_ref, atol=2e-3), "recon mismatch"

    print("KERNEL_OK")
</pallas_src>

<mosaic_0001>
module attributes {stable_mosaic.version = 11 : i64} {
  func.func @vae_kernel(%arg0: i32, %arg1: memref<8x128xbf16, #tpu.memory_space<vmem>>, %arg2: memref<8x128xf32, #tpu.memory_space<vmem>>, %arg3: memref<128x128xbf16, #tpu.memory_space<vmem>>, %arg4: memref<1x128xf32, #tpu.memory_space<vmem>>, %arg5: memref<128x256xbf16, #tpu.memory_space<vmem>>, %arg6: memref<1x256xf32, #tpu.memory_space<vmem>>, %arg7: memref<128x128xbf16, #tpu.memory_space<vmem>>, %arg8: memref<1x128xf32, #tpu.memory_space<vmem>>, %arg9: memref<128x128xbf16, #tpu.memory_space<vmem>>, %arg10: memref<1x128xf32, #tpu.memory_space<vmem>>, %arg11: memref<8x128xf32, #tpu.memory_space<vmem>>, %arg12: memref<8x256xf32, #tpu.memory_space<vmem>>) attributes {dimension_semantics = [#tpu.dimension_semantics<parallel>], iteration_bounds = array<i64: 1>, scalar_prefetch = 0 : i64, scratch_operands = 0 : i64, tpu.core_type = #tpu.core_type<tc>, window_params = [{transform_indices = @transform_0, window_bounds = array<i64: 8, 128>}, {transform_indices = @transform_1, window_bounds = array<i64: 8, 128>}, {pipeline_mode = #tpu.pipeline_mode<synchronous>, transform_indices = @transform_2, window_bounds = array<i64: 128, 128>}, {pipeline_mode = #tpu.pipeline_mode<synchronous>, transform_indices = @transform_3, window_bounds = array<i64: 1, 128>}, {pipeline_mode = #tpu.pipeline_mode<synchronous>, transform_indices = @transform_4, window_bounds = array<i64: 128, 256>}, {pipeline_mode = #tpu.pipeline_mode<synchronous>, transform_indices = @transform_5, window_bounds = array<i64: 1, 256>}, {pipeline_mode = #tpu.pipeline_mode<synchronous>, transform_indices = @transform_6, window_bounds = array<i64: 128, 128>}, {pipeline_mode = #tpu.pipeline_mode<synchronous>, transform_indices = @transform_7, window_bounds = array<i64: 1, 128>}, {pipeline_mode = #tpu.pipeline_mode<synchronous>, transform_indices = @transform_8, window_bounds = array<i64: 128, 128>}, {pipeline_mode = #tpu.pipeline_mode<synchronous>, transform_indices = @transform_9, window_bounds = array<i64: 1, 128>}, {transform_indices = @transform_10, window_bounds = array<i64: 8, 128>}, {transform_indices = @transform_11, window_bounds = array<i64: 8, 256>}]} {
    %c0 = arith.constant 0 : index
    %c0_0 = arith.constant 0 : index
    %0 = vector.load %arg1[%c0, %c0_0] : memref<8x128xbf16, #tpu.memory_space<vmem>>, vector<8x128xbf16>
    %c0_1 = arith.constant 0 : index
    %c0_2 = arith.constant 0 : index
    %1 = vector.load %arg2[%c0_1, %c0_2] : memref<8x128xf32, #tpu.memory_space<vmem>>, vector<8x128xf32>
    %c0_3 = arith.constant 0 : index
    %c0_4 = arith.constant 0 : index
    %2 = vector.load %arg3[%c0_3, %c0_4] : memref<128x128xbf16, #tpu.memory_space<vmem>>, vector<128x128xbf16>
    %cst = arith.constant dense<0.000000e+00> : vector<8x128xf32>
    %3 = tpu.matmul %0, %2, %cst {dimension_numbers = #tpu.dot_dimension_numbers<[1], [0], [0], [1], [0, 0, 1, 1], [], []>} : vector<8x128xbf16>, vector<128x128xbf16>, vector<8x128xf32> -> vector<8x128xf32>
    %c0_5 = arith.constant 0 : index
    %c0_6 = arith.constant 0 : index
    %4 = vector.load %arg4[%c0_5, %c0_6] : memref<1x128xf32, #tpu.memory_space<vmem>>, vector<1x128xf32>
    %5 = vector.broadcast %4 : vector<1x128xf32> to vector<8x128xf32>
    %6 = arith.addf %3, %5 : vector<8x128xf32>
    %cst_7 = arith.constant 0.000000e+00 : f32
    %7 = vector.broadcast %cst_7 : f32 to vector<8x128xf32>
    %8 = arith.maximumf %6, %7 : vector<8x128xf32>
    %9 = arith.truncf %8 : vector<8x128xf32> to vector<8x128xbf16>
    %c0_8 = arith.constant 0 : index
    %c0_9 = arith.constant 0 : index
    %10 = vector.load %arg5[%c0_8, %c0_9] : memref<128x256xbf16, #tpu.memory_space<vmem>>, vector<128x256xbf16>
    %cst_10 = arith.constant dense<0.000000e+00> : vector<8x256xf32>
    %11 = tpu.matmul %9, %10, %cst_10 {dimension_numbers = #tpu.dot_dimension_numbers<[1], [0], [0], [1], [0, 0, 1, 1], [], []>} : vector<8x128xbf16>, vector<128x256xbf16>, vector<8x256xf32> -> vector<8x256xf32>
    %c0_11 = arith.constant 0 : index
    %c0_12 = arith.constant 0 : index
    %12 = vector.load %arg6[%c0_11, %c0_12] : memref<1x256xf32, #tpu.memory_space<vmem>>, vector<1x256xf32>
    %13 = vector.broadcast %12 : vector<1x256xf32> to vector<8x256xf32>
    %14 = arith.addf %11, %13 : vector<8x256xf32>
    %c0_13 = arith.constant 0 : index
    %c0_14 = arith.constant 0 : index
    %15 = vector.load %arg12[%c0_13, %c0_14] : memref<8x256xf32, #tpu.memory_space<vmem>>, vector<8x256xf32>
    tpu.vector_store %arg12[%c0_13, %c0_14], %14 {strides = array<i32>} : memref<8x256xf32, #tpu.memory_space<vmem>>, vector<8x256xf32>,
    %16 = vector.extract_strided_slice %14 {offsets = [0, 0], sizes = [8, 128], strides = [1, 1]} : vector<8x256xf32> to vector<8x128xf32>
    %17 = vector.extract_strided_slice %14 {offsets = [0, 128], sizes = [8, 128], strides = [1, 1]} : vector<8x256xf32> to vector<8x128xf32>
    %cst_15 = arith.constant 5.000000e-01 : f32
    %18 = vector.broadcast %cst_15 : f32 to vector<8x128xf32>
    %19 = arith.mulf %18, %17 : vector<8x128xf32>
    %20 = math.exp %19 : vector<8x128xf32>
    %21 = arith.mulf %1, %20 : vector<8x128xf32>
    %22 = arith.addf %16, %21 : vector<8x128xf32>
    %23 = arith.truncf %22 : vector<8x128xf32> to vector<8x128xbf16>
    %c0_16 = arith.constant 0 : index
    %c0_17 = arith.constant 0 : index
    %24 = vector.load %arg7[%c0_16, %c0_17] : memref<128x128xbf16, #tpu.memory_space<vmem>>, vector<128x128xbf16>
    %cst_18 = arith.constant dense<0.000000e+00> : vector<8x128xf32>
    %25 = tpu.matmul %23, %24, %cst_18 {dimension_numbers = #tpu.dot_dimension_numbers<[1], [0], [0], [1], [0, 0, 1, 1], [], []>} : vector<8x128xbf16>, vector<128x128xbf16>, vector<8x128xf32> -> vector<8x128xf32>
    %c0_19 = arith.constant 0 : index
    %c0_20 = arith.constant 0 : index
    %26 = vector.load %arg8[%c0_19, %c0_20] : memref<1x128xf32, #tpu.memory_space<vmem>>, vector<1x128xf32>
    %27 = vector.broadcast %26 : vector<1x128xf32> to vector<8x128xf32>
    %28 = arith.addf %25, %27 : vector<8x128xf32>
    %cst_21 = arith.constant 0.000000e+00 : f32
    %29 = vector.broadcast %cst_21 : f32 to vector<8x128xf32>
    %30 = arith.maximumf %28, %29 : vector<8x128xf32>
    %31 = arith.truncf %30 : vector<8x128xf32> to vector<8x128xbf16>
    %c0_22 = arith.constant 0 : index
    %c0_23 = arith.constant 0 : index
    %32 = vector.load %arg9[%c0_22, %c0_23] : memref<128x128xbf16, #tpu.memory_space<vmem>>, vector<128x128xbf16>
    %cst_24 = arith.constant dense<0.000000e+00> : vector<8x128xf32>
    %33 = tpu.matmul %31, %32, %cst_24 {dimension_numbers = #tpu.dot_dimension_numbers<[1], [0], [0], [1], [0, 0, 1, 1], [], []>} : vector<8x128xbf16>, vector<128x128xbf16>, vector<8x128xf32> -> vector<8x128xf32>
    %c0_25 = arith.constant 0 : index
    %c0_26 = arith.constant 0 : index
    %34 = vector.load %arg10[%c0_25, %c0_26] : memref<1x128xf32, #tpu.memory_space<vmem>>, vector<1x128xf32>
    %35 = vector.broadcast %34 : vector<1x128xf32> to vector<8x128xf32>
    %36 = arith.addf %33, %35 : vector<8x128xf32>
    %cst_27 = arith.constant -6.000000e+01 : f32
    %37 = vector.broadcast %cst_27 : f32 to vector<8x128xf32>
    %38 = arith.maximumf %36, %37 : vector<8x128xf32>
    %cst_28 = arith.constant 0.000000e+00 : f32
    %39 = vector.broadcast %cst_28 : f32 to vector<8x128xf32>
    %40 = arith.subf %39, %38 : vector<8x128xf32>
    %41 = math.exp %40 : vector<8x128xf32>
    %cst_29 = arith.constant 1.000000e+00 : f32
    %42 = vector.broadcast %cst_29 : f32 to vector<8x128xf32>
    %43 = arith.addf %42, %41 : vector<8x128xf32>
    %44 = tpu.reciprocal %43 {approx = true} : vector<8x128xf32> -> vector<8x128xf32>
    %c0_30 = arith.constant 0 : index
    %c0_31 = arith.constant 0 : index
    %45 = vector.load %arg11[%c0_30, %c0_31] : memref<8x128xf32, #tpu.memory_space<vmem>>, vector<8x128xf32>
    tpu.vector_store %arg11[%c0_30, %c0_31], %44 {strides = array<i32>} : memref<8x128xf32, #tpu.memory_space<vmem>>, vector<8x128xf32>,
    return
  }
  func.func @transform_0(%arg0: i32) -> (i32, i32) {
    %c0_i32 = arith.constant 0 : i32
    %c0_i32_0 = arith.constant 0 : i32
    return %arg0, %c0_i32 : i32, i32
  }
  func.func @transform_1(%arg0: i32) -> (i32, i32) {
    %c0_i32 = arith.constant 0 : i32
    %c0_i32_0 = arith.constant 0 : i32
    return %arg0, %c0_i32 : i32, i32
  }
  func.func @transform_2(%arg0: i32) -> (i32, i32) {
    %c0_i32 = arith.constant 0 : i32
    %c0_i32_0 = arith.constant 0 : i32
    %c0_i32_1 = arith.constant 0 : i32
    return %c0_i32, %c0_i32_0 : i32, i32
  }
  func.func @transform_3(%arg0: i32) -> (i32, i32) {
    %c0_i32 = arith.constant 0 : i32
    %c0_i32_0 = arith.constant 0 : i32
    %c0_i32_1 = arith.constant 0 : i32
    return %c0_i32, %c0_i32_0 : i32, i32
  }
  func.func @transform_4(%arg0: i32) -> (i32, i32) {
    %c0_i32 = arith.constant 0 : i32
    %c0_i32_0 = arith.constant 0 : i32
    %c0_i32_1 = arith.constant 0 : i32
    return %c0_i32, %c0_i32_0 : i32, i32
  }
  func.func @transform_5(%arg0: i32) -> (i32, i32) {
    %c0_i32 = arith.constant 0 : i32
    %c0_i32_0 = arith.constant 0 : i32
    %c0_i32_1 = arith.constant 0 : i32
    return %c0_i32, %c0_i32_0 : i32, i32
  }
  func.func @transform_6(%arg0: i32) -> (i32, i32) {
    %c0_i32 = arith.constant 0 : i32
    %c0_i32_0 = arith.constant 0 : i32
    %c0_i32_1 = arith.constant 0 : i32
    return %c0_i32, %c0_i32_0 : i32, i32
  }
  func.func @transform_7(%arg0: i32) -> (i32, i32) {
    %c0_i32 = arith.constant 0 : i32
    %c0_i32_0 = arith.constant 0 : i32
    %c0_i32_1 = arith.constant 0 : i32
    return %c0_i32, %c0_i32_0 : i32, i32
  }
  func.func @transform_8(%arg0: i32) -> (i32, i32) {
    %c0_i32 = arith.constant 0 : i32
    %c0_i32_0 = arith.constant 0 : i32
    %c0_i32_1 = arith.constant 0 : i32
    return %c0_i32, %c0_i32_0 : i32, i32
  }
  func.func @transform_9(%arg0: i32) -> (i32, i32) {
    %c0_i32 = arith.constant 0 : i32
    %c0_i32_0 = arith.constant 0 : i32
    %c0_i32_1 = arith.constant 0 : i32
    return %c0_i32, %c0_i32_0 : i32, i32
  }
  func.func @transform_10(%arg0: i32) -> (i32, i32) {
    %c0_i32 = arith.constant 0 : i32
    %c0_i32_0 = arith.constant 0 : i32
    return %arg0, %c0_i32 : i32, i32
  }
  func.func @transform_11(%arg0: i32) -> (i32, i32) {
    %c0_i32 = arith.constant 0 : i32
    %c0_i32_0 = arith.constant 0 : i32
    return %arg0, %c0_i32 : i32, i32
  }
}

</mosaic_0001>

<llo_original>
// kernel: vae_forward.1
$region0: #{vae_forward.1}
  #allocation0 [shape = 'u32[]', space=smem, size = 0x4, offset = 0x4, fixed_abs, tag = 'smem constant byte address 0x4 - core index']
  #allocation1 [shape = 'u32[144,128]{1,0:T(1,128)}', space=vmem, size = 0x12000, scoped, tag = 'internal scratch']
  %s0 = inlined_call_operand.vmem [shape: bf16[8,128], index: 0, kind: input, shape index: {}]
  %s1 = inlined_call_operand.vmem [shape: f32[8,128], index: 1, kind: input, shape index: {}]
  %s2 = inlined_call_operand.hbm [shape: bf16[128,128], index: 2, kind: input, shape index: {}]
  %s3 = inlined_call_operand.vmem [shape: f32[1,128], index: 3, kind: input, shape index: {}]
  %s4 = inlined_call_operand.hbm [shape: bf16[128,256], index: 4, kind: input, shape index: {}]
  %s5 = inlined_call_operand.vmem [shape: f32[1,256], index: 5, kind: input, shape index: {}]
  %s6 = inlined_call_operand.hbm [shape: bf16[128,128], index: 6, kind: input, shape index: {}]
  %s7 = inlined_call_operand.vmem [shape: f32[1,128], index: 7, kind: input, shape index: {}]
  %s8 = inlined_call_operand.hbm [shape: bf16[128,128], index: 8, kind: input, shape index: {}]
  %s9 = inlined_call_operand.vmem [shape: f32[1,128], index: 9, kind: input, shape index: {}]
  %s10 = inlined_call_operand.vmem [shape: f32[8,128], index: 10, kind: output, shape index: {0}]
  %s11 = inlined_call_operand.vmem [shape: f32[8,256], index: 11, kind: output, shape index: {1}]
  %12 = xla_tuple %s10, %s11
  %s13 = sld [smem:[#allocation0]]
  $region74: #{vae_forward.1} parent=0
    _
  %s15 = ssub.s32 1, %s13
  %s16 = scalar_select 0, %s15, %s13
  $region1: #{vae_forward.1} parent=0
    #allocation2 [shape = 'u8[32768]{0}', space=vmem, size = 0x8000, scoped, tag = 'input window, operand 2, single buffered']
    #allocation3 [shape = 's32[1]{0}', space=sflag, size = 0x4, scoped, tag = 'scoped memory for vae_forward.1']
    #allocation4 [shape = 'u8[65536]{0}', space=vmem, size = 0x10000, scoped, tag = 'input window, operand 4, single buffered']
    #allocation5 [shape = 's32[1]{0}', space=sflag, size = 0x4, scoped, tag = 'scoped memory for vae_forward.1']
    #allocation6 [shape = 'u8[32768]{0}', space=vmem, size = 0x8000, scoped, tag = 'input window, operand 6, single buffered']
    #allocation7 [shape = 'u8[32768]{0}', space=vmem, size = 0x8000, scoped, tag = 'input window, operand 8, single buffered']
    #allocation8 [shape = 's32[1]{0}', space=sflag, size = 0x4, scoped, tag = 'scoped memory for vae_forward.1']
    %17 = vsyncpa [#allocation3], 0
    %18 = vsyncpa [#allocation5], 0
    %19 = vsyncpa [#allocation8], 0
    // Predicated region
    $region2: #{vae_forward.1} parent=1 // pred_check
      _
    $region3: #{vae_forward.1} parent=1 // pred_check_branch
      %21 = sbr.rel (0) target = $region5
    $region4: #{vae_forward.1} parent=1 // pred_region
      _
    $region5: #{vae_forward.1} parent=1 // pred_fallthru
      _
    // Predicated region
    $region6: #{vae_forward.1} parent=1 // pred_check
      _
    $region7: #{vae_forward.1} parent=1 // pred_check_branch
      %23 = sbr.rel (0) target = $region9
    $region8: #{vae_forward.1} parent=1 // pred_region
      _
    $region9: #{vae_forward.1} parent=1 // pred_fallthru
      _
    // Predicated region
    $region10: #{vae_forward.1} parent=1 // pred_check
      _
    $region11: #{vae_forward.1} parent=1 // pred_check_branch
      %25 = sbr.rel (0) target = $region13
    $region12: #{vae_forward.1} parent=1 // pred_region
      %s27 = ssub.s32 1024, 1024
      %28 = vsyncadd [#allocation3], %s27
      %s29 = sshll.u32 [#allocation2], 4
      %s30 = int_to_ptr.vmem [resolvable:$true] %s29
      %35 = dma.hbm_to_vmem [thread:$0]  %s2, 1024, %s30, [#allocation3], 64, 64, 4
    $region13: #{vae_forward.1} parent=1 // pred_fallthru
      _
    // Predicated region
    $region14: #{vae_forward.1} parent=1 // pred_check
      _
    $region15: #{vae_forward.1} parent=1 // pred_check_branch
      %37 = sbr.rel (0) target = $region17
    $region16: #{vae_forward.1} parent=1 // pred_region
      _
    $region17: #{vae_forward.1} parent=1 // pred_fallthru
      _
    // Predicated region
    $region18: #{vae_forward.1} parent=1 // pred_check
      _
    $region19: #{vae_forward.1} parent=1 // pred_check_branch
      %39 = sbr.rel (0) target = $region21
    $region20: #{vae_forward.1} parent=1 // pred_region
      %s41 = ssub.s32 2048, 2048
      %42 = vsyncadd [#allocation5], %s41
      %s43 = sshll.u32 [#allocation4], 4
      %s44 = int_to_ptr.vmem [resolvable:$true] %s43
      %49 = dma.hbm_to_vmem [thread:$0]  %s4, 2048, %s44, [#allocation5], 128, 128, 8
    $region21: #{vae_forward.1} parent=1 // pred_fallthru
      _
    // Predicated region
    $region22: #{vae_forward.1} parent=1 // pred_check
      _
    $region23: #{vae_forward.1} parent=1 // pred_check_branch
      %51 = sbr.rel (0) target = $region25
    $region24: #{vae_forward.1} parent=1 // pred_region
      _
    $region25: #{vae_forward.1} parent=1 // pred_fallthru
      _
    // Predicated region
    $region26: #{vae_forward.1} parent=1 // pred_check
      _
    $region27: #{vae_forward.1} parent=1 // pred_check_branch
      %53 = sbr.rel (0) target = $region29
    $region28: #{vae_forward.1} parent=1 // pred_region
      %s55 = ssub.s32 1024, 1024
      %56 = vsyncadd [#allocation5], %s55
      %s57 = sshll.u32 [#allocation6], 4
      %s58 = int_to_ptr.vmem [resolvable:$true] %s57
      %63 = dma.hbm_to_vmem [thread:$0]  %s6, 1024, %s58, [#allocation5], 64, 64, 4
    $region29: #{vae_forward.1} parent=1 // pred_fallthru
      _
    // Predicated region
    $region30: #{vae_forward.1} parent=1 // pred_check
      _
    $region31: #{vae_forward.1} parent=1 // pred_check_branch
      %65 = sbr.rel (0) target = $region33
    $region32: #{vae_forward.1} parent=1 // pred_region
      _
    $region33: #{vae_forward.1} parent=1 // pred_fallthru
      _
    // Predicated region
    $region34: #{vae_forward.1} parent=1 // pred_check
      _
    $region35: #{vae_forward.1} parent=1 // pred_check_branch
      %67 = sbr.rel (0) target = $region37
    $region36: #{vae_forward.1} parent=1 // pred_region
      %s69 = ssub.s32 1024, 1024
      %70 = vsyncadd [#allocation8], %s69
      %s71 = sshll.u32 [#allocation7], 4
      %s72 = int_to_ptr.vmem [resolvable:$true] %s71
      %77 = dma.hbm_to_vmem [thread:$0]  %s8, 1024, %s72, [#allocation8], 64, 64, 4
    $region37: #{vae_forward.1} parent=1 // pred_fallthru
      _
    // Predicated region
    $region38: #{vae_forward.1} parent=1 // pred_check
      _
    $region39: #{vae_forward.1} parent=1 // pred_check_branch
      %79 = sbr.rel (0) target = $region41
    $region40: #{vae_forward.1} parent=1 // pred_region
      _
    $region41: #{vae_forward.1} parent=1 // pred_fallthru
      _
    // Predicated region
    $region42: #{vae_forward.1} parent=1 // pred_check
      _
    $region43: #{vae_forward.1} parent=1 // pred_check_branch
      %81 = sbr.rel (0) target = $region45
    $region44: #{vae_forward.1} parent=1 // pred_region
      %82 = dma.done [#allocation3], 1024
    $region45: #{vae_forward.1} parent=1 // pred_fallthru
      _
    // Predicated region
    $region46: #{vae_forward.1} parent=1 // pred_check
      _
    $region47: #{vae_forward.1} parent=1 // pred_check_branch
      %84 = sbr.rel (0) target = $region49
    $region48: #{vae_forward.1} parent=1 // pred_region
      %85 = dma.done [#allocation5], 2048
    $region49: #{vae_forward.1} parent=1 // pred_fallthru
      _
    // Predicated region
    $region50: #{vae_forward.1} parent=1 // pred_check
      _
    $region51: #{vae_forward.1} parent=1 // pred_check_branch
      %87 = sbr.rel (0) target = $region53
    $region52: #{vae_forward.1} parent=1 // pred_region
      %88 = dma.done [#allocation5], 1024
    $region53: #{vae_forward.1} parent=1 // pred_fallthru
      _
    // Predicated region
    $region54: #{vae_forward.1} parent=1 // pred_check
      _
    $region55: #{vae_forward.1} parent=1 // pred_check_branch
      %90 = sbr.rel (0) target = $region57
    $region56: #{vae_forward.1} parent=1 // pred_region
      %91 = dma.done [#allocation8], 1024
    $region57: #{vae_forward.1} parent=1 // pred_fallthru
      _
    %v93 = vld [vmem:[%s0] sm:$0xf]
    %v94 = vld [vmem:[%s1] sm:$0xff]
    %v95 = vld [vmem:[#allocation2] sm:$0xf]
    %v96 = vld [vmem:[#allocation2 + $0x4] sm:$0xf]
    %v97 = vld [vmem:[#allocation2 + $0x8] sm:$0xf]
    %v98 = vld [vmem:[#allocation2 + $0xc] sm:$0xf]
    %v99 = vld [vmem:[#allocation2 + $0x10] sm:$0xf]
    %v100 = vld [vmem:[#allocation2 + $0x14] sm:$0xf]
    %v101 = vld [vmem:[#allocation2 + $0x18] sm:$0xf]
    %v102 = vld [vmem:[#allocation2 + $0x1c] sm:$0xf]
    %v103 = vld [vmem:[#allocation2 + $0x20] sm:$0xf]
    %v104 = vld [vmem:[#allocation2 + $0x24] sm:$0xf]
    %v105 = vld [vmem:[#allocation2 + $0x28] sm:$0xf]
    %v106 = vld [vmem:[#allocation2 + $0x2c] sm:$0xf]
    %v107 = vld [vmem:[#allocation2 + $0x30] sm:$0xf]
    %v108 = vld [vmem:[#allocation2 + $0x34] sm:$0xf]
    %v109 = vld [vmem:[#allocation2 + $0x38] sm:$0xf]
    %v110 = vld [vmem:[#allocation2 + $0x3c] sm:$0xf]
    %v111 = vld [vmem:[%s3] sm:$0x1]
    %v113 = vlaneseq
    %v114 = vshrl.u32 %v113, 7
    %v115 = vsub.s32 0, %v114
    %v116 = vrot.slane %v111, %v115
    %v134 = vunpack.c.l.b16 %v95
    %v135 = vunpack.c.l.b16 %v96
    %v136 = vunpack.c.l.b16 %v97
    %v137 = vunpack.c.l.b16 %v98
    %v138 = vunpack.c.l.b16 %v99
    %v139 = vunpack.c.l.b16 %v100
    %v140 = vunpack.c.l.b16 %v101
    %v141 = vunpack.c.l.b16 %v102
    %v142 = vunpack.c.l.b16 %v103
    %v143 = vunpack.c.l.b16 %v104
    %v144 = vunpack.c.l.b16 %v105
    %v145 = vunpack.c.l.b16 %v106
    %v146 = vunpack.c.l.b16 %v107
    %v147 = vunpack.c.l.b16 %v108
    %v148 = vunpack.c.l.b16 %v109
    %v149 = vunpack.c.l.b16 %v110
    %v150 = vpack.c.b16 %v135, %v134
    %v151 = vpack.c.b16 %v137, %v136
    %v152 = vpack.c.b16 %v139, %v138
    %v153 = vpack.c.b16 %v141, %v140
    %v154 = vpack.c.b16 %v143, %v142
    %v155 = vpack.c.b16 %v145, %v144
    %v156 = vpack.c.b16 %v147, %v146
    %v157 = vpack.c.b16 %v149, %v148
    %166 = vmatprep.subr.bf16.mxu0 0
    %167 = vmatpush1.bf16.msra.mxu0 %v150
    %168 = vmatprep.subr.bf16.mxu0 0
    %169 = vmatpush1.bf16.msra.mxu0 %v151
    %170 = vmatprep.subr.bf16.mxu0 0
    %171 = vmatpush1.bf16.msra.mxu0 %v152
    %172 = vmatprep.subr.bf16.mxu0 0
    %173 = vmatpush1.bf16.msra.mxu0 %v153
    %174 = vmatprep.subr.bf16.mxu0 0
    %175 = vmatpush1.bf16.msra.mxu0 %v154
    %176 = vmatprep.subr.bf16.mxu0 0
    %177 = vmatpush1.bf16.msra.mxu0 %v155
    %178 = vmatprep.subr.bf16.mxu0 0
    %179 = vmatpush1.bf16.msra.mxu0 %v156
    %180 = vmatprep.subr.bf16.mxu0 0
    %181 = vmatpush1.bf16.msra.mxu0 %v157
    %182 = vmatprep.subr.bf16.mxu0 0
    %183 = vmatpush1.bf16.msra.mxu0 0
    %184 = vmatprep.subr.bf16.mxu0 0
    %185 = vmatpush1.bf16.msra.mxu0 0
    %186 = vmatprep.subr.bf16.mxu0 0
    %187 = vmatpush1.bf16.msra.mxu0 0
    %188 = vmatprep.subr.bf16.mxu0 0
    %189 = vmatpush1.bf16.msra.mxu0 0
    %190 = vmatprep.subr.bf16.mxu0 0
    %191 = vmatpush1.bf16.msra.mxu0 0
    %192 = vmatprep.subr.bf16.mxu0 0
    %193 = vmatpush1.bf16.msra.mxu0 0
    %194 = vmatprep.subr.bf16.mxu0 0
    %195 = vmatpush1.bf16.msra.mxu0 0
    %196 = vmatprep.subr.bf16.mxu0 0
    %197 = vmatpush1.bf16.msra.mxu0 0
    %198 = vmatprep.mubr.bf16.mxu0 0
    %199 = vmatmul.mubr.bf16.gmra.mrb[0].mxu0 %v93
    %v200 = vpop.f32.mrb[0].mxu0
    %v201 = vadd.f32 %v116, %v200
    %v202 = vpop.f32.mrb[0].mxu0
    %v203 = vpop.f32.mrb[0].mxu0
    %v204 = vpop.f32.mrb[0].mxu0
    %205 = vdwg.mxu0
    %v206 = vmax.f32 %v201, 0.0
    %v207 = vpack.c.bf16 %v206, %v206
    %v208 = vld [vmem:[#allocation4] sm:$0xff]
    %v209 = vld [vmem:[#allocation4 + $0x8] sm:$0xff]
    %v210 = vld [vmem:[#allocation4 + $0x10] sm:$0xff]
    %v211 = vld [vmem:[#allocation4 + $0x18] sm:$0xff]
    %v212 = vld [vmem:[#allocation4 + $0x20] sm:$0xff]
    %v213 = vld [vmem:[#allocation4 + $0x28] sm:$0xff]
    %v214 = vld [vmem:[#allocation4 + $0x30] sm:$0xff]
    %v215 = vld [vmem:[#allocation4 + $0x38] sm:$0xff]
    %v216 = vld [vmem:[#allocation4 + $0x40] sm:$0xff]
    %v217 = vld [vmem:[#allocation4 + $0x48] sm:$0xff]
    %v218 = vld [vmem:[#allocation4 + $0x50] sm:$0xff]
    %v219 = vld [vmem:[#allocation4 + $0x58] sm:$0xff]
    %v220 = vld [vmem:[#allocation4 + $0x60] sm:$0xff]
    %v221 = vld [vmem:[#allocation4 + $0x68] sm:$0xff]
    %v222 = vld [vmem:[#allocation4 + $0x70] sm:$0xff]
    %v223 = vld [vmem:[#allocation4 + $0x78] sm:$0xff]
    %v224 = vld [vmem:[%s5] sm:$0x3]
    %v226 = vlaneseq
    %v227 = vshrl.u32 %v226, 7
    %v228 = vsub.s32 0, %v227
    %v229 = vrot.slane %v224, %v228
    %v230 = vlaneseq
    %v231 = vshrl.u32 %v230, 7
    %v232 = vsub.s32 1, %v231
    %v233 = vrot.slane %v224, %v232
    %v252 = vunpack.c.l.b16 %v208
    %v253 = vunpack.c.h.b16 %v208
    %v254 = vunpack.c.l.b16 %v209
    %v255 = vunpack.c.h.b16 %v209
    %v256 = vunpack.c.l.b16 %v210
    %v257 = vunpack.c.h.b16 %v210
    %v258 = vunpack.c.l.b16 %v211
    %v259 = vunpack.c.h.b16 %v211
    %v260 = vunpack.c.l.b16 %v212
    %v261 = vunpack.c.h.b16 %v212
    %v262 = vunpack.c.l.b16 %v213
    %v263 = vunpack.c.h.b16 %v213
    %v264 = vunpack.c.l.b16 %v214
    %v265 = vunpack.c.h.b16 %v214
    %v266 = vunpack.c.l.b16 %v215
    %v267 = vunpack.c.h.b16 %v215
    %v268 = vunpack.c.l.b16 %v216
    %v269 = vunpack.c.h.b16 %v216
    %v270 = vunpack.c.l.b16 %v217
    %v271 = vunpack.c.h.b16 %v217
    %v272 = vunpack.c.l.b16 %v218
    %v273 = vunpack.c.h.b16 %v218
    %v274 = vunpack.c.l.b16 %v219
    %v275 = vunpack.c.h.b16 %v219
    %v276 = vunpack.c.l.b16 %v220
    %v277 = vunpack.c.h.b16 %v220
    %v278 = vunpack.c.l.b16 %v221
    %v279 = vunpack.c.h.b16 %v221
    %v280 = vunpack.c.l.b16 %v222
    %v281 = vunpack.c.h.b16 %v222
    %v282 = vunpack.c.l.b16 %v223
    %v283 = vunpack.c.h.b16 %v223
    %v284 = vpack.c.b16 %v254, %v252
    %v285 = vpack.c.b16 %v255, %v253
    %v286 = vpack.c.b16 %v258, %v256
    %v287 = vpack.c.b16 %v259, %v257
    %v288 = vpack.c.b16 %v262, %v260
    %v289 = vpack.c.b16 %v263, %v261
    %v290 = vpack.c.b16 %v266, %v264
    %v291 = vpack.c.b16 %v267, %v265
    %v292 = vpack.c.b16 %v270, %v268
    %v293 = vpack.c.b16 %v271, %v269
    %v294 = vpack.c.b16 %v274, %v272
    %v295 = vpack.c.b16 %v275, %v273
    %v296 = vpack.c.b16 %v278, %v276
    %v297 = vpack.c.b16 %v279, %v277
    %v298 = vpack.c.b16 %v282, %v280
    %v299 = vpack.c.b16 %v283, %v281
    %316 = vmatprep.subr.bf16.mxu0 %v285
    %317 = vmatpush1.bf16.msra.mxu0 %v284
    %318 = vmatprep.subr.bf16.mxu0 %v287
    %319 = vmatpush1.bf16.msra.mxu0 %v286
    %320 = vmatprep.subr.bf16.mxu0 %v289
    %321 = vmatpush1.bf16.msra.mxu0 %v288
    %322 = vmatprep.subr.bf16.mxu0 %v291
    %323 = vmatpush1.bf16.msra.mxu0 %v290
    %324 = vmatprep.subr.bf16.mxu0 %v293
    %325 = vmatpush1.bf16.msra.mxu0 %v292
    %326 = vmatprep.subr.bf16.mxu0 %v295
    %327 = vmatpush1.bf16.msra.mxu0 %v294
    %328 = vmatprep.subr.bf16.mxu0 %v297
    %329 = vmatpush1.bf16.msra.mxu0 %v296
    %330 = vmatprep.subr.bf16.mxu0 %v299
    %331 = vmatpush1.bf16.msra.mxu0 %v298
    %332 = vmatprep.subr.bf16.mxu0 0
    %333 = vmatpush1.bf16.msra.mxu0 0
    %334 = vmatprep.subr.bf16.mxu0 0
    %335 = vmatpush1.bf16.msra.mxu0 0
    %336 = vmatprep.subr.bf16.mxu0 0
    %337 = vmatpush1.bf16.msra.mxu0 0
    %338 = vmatprep.subr.bf16.mxu0 0
    %339 = vmatpush1.bf16.msra.mxu0 0
    %340 = vmatprep.subr.bf16.mxu0 0
    %341 = vmatpush1.bf16.msra.mxu0 0
    %342 = vmatprep.subr.bf16.mxu0 0
    %343 = vmatpush1.bf16.msra.mxu0 0
    %344 = vmatprep.subr.bf16.mxu0 0
    %345 = vmatpush1.bf16.msra.mxu0 0
    %346 = vmatprep.subr.bf16.mxu0 0
    %347 = vmatpush1.bf16.msra.mxu0 0
    %348 = vmatprep.mubr.bf16.mxu0 0
    %349 = vmatmul.mubr.bf16.gmra.mrb[0].mxu0 %v207
    %v350 = vpop.f32.mrb[0].mxu0
    %v351 = vadd.f32 %v229, %v350
    %v352 = vpop.f32.mrb[0].mxu0
    %v353 = vadd.f32 %v233, %v352
    %v354 = vpop.f32.mrb[0].mxu0
    %v355 = vpop.f32.mrb[0].mxu0
    %356 = vdwg.mxu0
    %357 = vst [vmem:[%s11] sm:$0xff] %v351
    %358 = vst [vmem:[%s11 + $0x8] sm:$0xff] %v353
    %v359 = vmul.f32 %v353, 0.5
    %v360 = vmul.f32 %v359, 1.442695
    %v361 = vpow.pop %v360
    %v362 = vmul.f32 %v94, %v361
    %v363 = vadd.f32 %v351, %v362
    %v364 = vpack.c.bf16 %v363, %v363
    %v365 = vld [vmem:[#allocation6] sm:$0xf]
    %v366 = vld [vmem:[#allocation6 + $0x4] sm:$0xf]
    %v367 = vld [vmem:[#allocation6 + $0x8] sm:$0xf]
    %v368 = vld [vmem:[#allocation6 + $0xc] sm:$0xf]
    %v369 = vld [vmem:[#allocation6 + $0x10] sm:$0xf]
    %v370 = vld [vmem:[#allocation6 + $0x14] sm:$0xf]
    %v371 = vld [vmem:[#allocation6 + $0x18] sm:$0xf]
    %v372 = vld [vmem:[#allocation6 + $0x1c] sm:$0xf]
    %v373 = vld [vmem:[#allocation6 + $0x20] sm:$0xf]
    %v374 = vld [vmem:[#allocation6 + $0x24] sm:$0xf]
    %v375 = vld [vmem:[#allocation6 + $0x28] sm:$0xf]
    %v376 = vld [vmem:[#allocation6 + $0x2c] sm:$0xf]
    %v377 = vld [vmem:[#allocation6 + $0x30] sm:$0xf]
    %v378 = vld [vmem:[#allocation6 + $0x34] sm:$0xf]
    %v379 = vld [vmem:[#allocation6 + $0x38] sm:$0xf]
    %v380 = vld [vmem:[#allocation6 + $0x3c] sm:$0xf]
    %v381 = vld [vmem:[%s7] sm:$0x1]
    %v383 = vlaneseq
    %v384 = vshrl.u32 %v383, 7
    %v385 = vsub.s32 0, %v384
    %v386 = vrot.slane %v381, %v385
    %v404 = vunpack.c.l.b16 %v365
    %v405 = vunpack.c.l.b16 %v366
    %v406 = vunpack.c.l.b16 %v367
    %v407 = vunpack.c.l.b16 %v368
    %v408 = vunpack.c.l.b16 %v369
    %v409 = vunpack.c.l.b16 %v370
    %v410 = vunpack.c.l.b16 %v371
    %v411 = vunpack.c.l.b16 %v372
    %v412 = vunpack.c.l.b16 %v373
    %v413 = vunpack.c.l.b16 %v374
    %v414 = vunpack.c.l.b16 %v375
    %v415 = vunpack.c.l.b16 %v376
    %v416 = vunpack.c.l.b16 %v377
    %v417 = vunpack.c.l.b16 %v378
    %v418 = vunpack.c.l.b16 %v379
    %v419 = vunpack.c.l.b16 %v380
    %v420 = vpack.c.b16 %v405, %v404
    %v421 = vpack.c.b16 %v407, %v406
    %v422 = vpack.c.b16 %v409, %v408
    %v423 = vpack.c.b16 %v411, %v410
    %v424 = vpack.c.b16 %v413, %v412
    %v425 = vpack.c.b16 %v415, %v414
    %v426 = vpack.c.b16 %v417, %v416
    %v427 = vpack.c.b16 %v419, %v418
    %436 = vmatprep.subr.bf16.mxu0 0
    %437 = vmatpush1.bf16.msra.mxu0 %v420
    %438 = vmatprep.subr.bf16.mxu0 0
    %439 = vmatpush1.bf16.msra.mxu0 %v421
    %440 = vmatprep.subr.bf16.mxu0 0
    %441 = vmatpush1.bf16.msra.mxu0 %v422
    %442 = vmatprep.subr.bf16.mxu0 0
    %443 = vmatpush1.bf16.msra.mxu0 %v423
    %444 = vmatprep.subr.bf16.mxu0 0
    %445 = vmatpush1.bf16.msra.mxu0 %v424
    %446 = vmatprep.subr.bf16.mxu0 0
    %447 = vmatpush1.bf16.msra.mxu0 %v425
    %448 = vmatprep.subr.bf16.mxu0 0
    %449 = vmatpush1.bf16.msra.mxu0 %v426
    %450 = vmatprep.subr.bf16.mxu0 0
    %451 = vmatpush1.bf16.msra.mxu0 %v427
    %452 = vmatprep.subr.bf16.mxu0 0
    %453 = vmatpush1.bf16.msra.mxu0 0
    %454 = vmatprep.subr.bf16.mxu0 0
    %455 = vmatpush1.bf16.msra.mxu0 0
    %456 = vmatprep.subr.bf16.mxu0 0
    %457 = vmatpush1.bf16.msra.mxu0 0
    %458 = vmatprep.subr.bf16.mxu0 0
    %459 = vmatpush1.bf16.msra.mxu0 0
    %460 = vmatprep.subr.bf16.mxu0 0
    %461 = vmatpush1.bf16.msra.mxu0 0
    %462 = vmatprep.subr.bf16.mxu0 0
    %463 = vmatpush1.bf16.msra.mxu0 0
    %464 = vmatprep.subr.bf16.mxu0 0
    %465 = vmatpush1.bf16.msra.mxu0 0
    %466 = vmatprep.subr.bf16.mxu0 0
    %467 = vmatpush1.bf16.msra.mxu0 0
    %468 = vmatprep.mubr.bf16.mxu0 0
    %469 = vmatmul.mubr.bf16.gmra.mrb[0].mxu0 %v364
    %v470 = vpop.f32.mrb[0].mxu0
    %v471 = vadd.f32 %v386, %v470
    %v472 = vpop.f32.mrb[0].mxu0
    %v473 = vpop.f32.mrb[0].mxu0
    %v474 = vpop.f32.mrb[0].mxu0
    %475 = vdwg.mxu0
    %v476 = vmax.f32 %v471, 0.0
    %v477 = vpack.c.bf16 %v476, %v476
    %v478 = vld [vmem:[#allocation7] sm:$0xf]
    %v479 = vld [vmem:[#allocation7 + $0x4] sm:$0xf]
    %v480 = vld [vmem:[#allocation7 + $0x8] sm:$0xf]
    %v481 = vld [vmem:[#allocation7 + $0xc] sm:$0xf]
    %v482 = vld [vmem:[#allocation7 + $0x10] sm:$0xf]
    %v483 = vld [vmem:[#allocation7 + $0x14] sm:$0xf]
    %v484 = vld [vmem:[#allocation7 + $0x18] sm:$0xf]
    %v485 = vld [vmem:[#allocation7 + $0x1c] sm:$0xf]
    %v486 = vld [vmem:[#allocation7 + $0x20] sm:$0xf]
    %v487 = vld [vmem:[#allocation7 + $0x24] sm:$0xf]
    %v488 = vld [vmem:[#allocation7 + $0x28] sm:$0xf]
    %v489 = vld [vmem:[#allocation7 + $0x2c] sm:$0xf]
    %v490 = vld [vmem:[#allocation7 + $0x30] sm:$0xf]
    %v491 = vld [vmem:[#allocation7 + $0x34] sm:$0xf]
    %v492 = vld [vmem:[#allocation7 + $0x38] sm:$0xf]
    %v493 = vld [vmem:[#allocation7 + $0x3c] sm:$0xf]
    %v494 = vld [vmem:[%s9] sm:$0x1]
    %v496 = vlaneseq
    %v497 = vshrl.u32 %v496, 7
    %v498 = vsub.s32 0, %v497
    %v499 = vrot.slane %v494, %v498
    %v517 = vunpack.c.l.b16 %v478
    %v518 = vunpack.c.l.b16 %v479
    %v519 = vunpack.c.l.b16 %v480
    %v520 = vunpack.c.l.b16 %v481
    %v521 = vunpack.c.l.b16 %v482
    %v522 = vunpack.c.l.b16 %v483
    %v523 = vunpack.c.l.b16 %v484
    %v524 = vunpack.c.l.b16 %v485
    %v525 = vunpack.c.l.b16 %v486
    %v526 = vunpack.c.l.b16 %v487
    %v527 = vunpack.c.l.b16 %v488
    %v528 = vunpack.c.l.b16 %v489
    %v529 = vunpack.c.l.b16 %v490
    %v530 = vunpack.c.l.b16 %v491
    %v531 = vunpack.c.l.b16 %v492
    %v532 = vunpack.c.l.b16 %v493
    %v533 = vpack.c.b16 %v518, %v517
    %v534 = vpack.c.b16 %v520, %v519
    %v535 = vpack.c.b16 %v522, %v521
    %v536 = vpack.c.b16 %v524, %v523
    %v537 = vpack.c.b16 %v526, %v525
    %v538 = vpack.c.b16 %v528, %v527
    %v539 = vpack.c.b16 %v530, %v529
    %v540 = vpack.c.b16 %v532, %v531
    %549 = vmatprep.subr.bf16.mxu0 0
    %550 = vmatpush1.bf16.msra.mxu0 %v533
    %551 = vmatprep.subr.bf16.mxu0 0
    %552 = vmatpush1.bf16.msra.mxu0 %v534
    %553 = vmatprep.subr.bf16.mxu0 0
    %554 = vmatpush1.bf16.msra.mxu0 %v535
    %555 = vmatprep.subr.bf16.mxu0 0
    %556 = vmatpush1.bf16.msra.mxu0 %v536
    %557 = vmatprep.subr.bf16.mxu0 0
    %558 = vmatpush1.bf16.msra.mxu0 %v537
    %559 = vmatprep.subr.bf16.mxu0 0
    %560 = vmatpush1.bf16.msra.mxu0 %v538
    %561 = vmatprep.subr.bf16.mxu0 0
    %562 = vmatpush1.bf16.msra.mxu0 %v539
    %563 = vmatprep.subr.bf16.mxu0 0
    %564 = vmatpush1.bf16.msra.mxu0 %v540
    %565 = vmatprep.subr.bf16.mxu0 0
    %566 = vmatpush1.bf16.msra.mxu0 0
    %567 = vmatprep.subr.bf16.mxu0 0
    %568 = vmatpush1.bf16.msra.mxu0 0
    %569 = vmatprep.subr.bf16.mxu0 0
    %570 = vmatpush1.bf16.msra.mxu0 0
    %571 = vmatprep.subr.bf16.mxu0 0
    %572 = vmatpush1.bf16.msra.mxu0 0
    %573 = vmatprep.subr.bf16.mxu0 0
    %574 = vmatpush1.bf16.msra.mxu0 0
    %575 = vmatprep.subr.bf16.mxu0 0
    %576 = vmatpush1.bf16.msra.mxu0 0
    %577 = vmatprep.subr.bf16.mxu0 0
    %578 = vmatpush1.bf16.msra.mxu0 0
    %579 = vmatprep.subr.bf16.mxu0 0
    %580 = vmatpush1.bf16.msra.mxu0 0
    %581 = vmatprep.mubr.bf16.mxu0 0
    %582 = vmatmul.mubr.bf16.gmra.mrb[0].mxu0 %v477
    %v583 = vpop.f32.mrb[0].mxu0
    %v584 = vadd.f32 %v499, %v583
    %v585 = vpop.f32.mrb[0].mxu0
    %v586 = vpop.f32.mrb[0].mxu0
    %v587 = vpop.f32.mrb[0].mxu0
    %588 = vdwg.mxu0
    %v589 = vmax.f32 %v584, -60.0
    %v590 = vsub.f32 0.0, %v589
    %v591 = vmul.f32 %v590, 1.442695
    %v592 = vpow.pop %v591
    %v593 = vadd.f32 %v592, 1.0
    %v594 = vrcp.pop %v593
    %595 = vst [vmem:[%s10] sm:$0xff] %v594
    // Predicated region
    $region58: #{vae_forward.1} parent=1 // pred_check
      _
    $region59: #{vae_forward.1} parent=1 // pred_check_branch
      %597 = sbr.rel (0) target = $region61
    $region60: #{vae_forward.1} parent=1 // pred_region
      _
    $region61: #{vae_forward.1} parent=1 // pred_fallthru
      _
    // Predicated region
    $region62: #{vae_forward.1} parent=1 // pred_check
      _
    $region63: #{vae_forward.1} parent=1 // pred_check_branch
      %599 = sbr.rel (0) target = $region65
    $region64: #{vae_forward.1} parent=1 // pred_region
      _
    $region65: #{vae_forward.1} parent=1 // pred_fallthru
      _
    // Predicated region
    $region66: #{vae_forward.1} parent=1 // pred_check
      _
    $region67: #{vae_forward.1} parent=1 // pred_check_branch
      %601 = sbr.rel (0) target = $region69
    $region68: #{vae_forward.1} parent=1 // pred_region
      _
    $region69: #{vae_forward.1} parent=1 // pred_fallthru
      _
    // Predicated region
    $region70: #{vae_forward.1} parent=1 // pred_check
      _
    $region71: #{vae_forward.1} parent=1 // pred_check_branch
      %603 = sbr.rel (0) target = $region73
    $region72: #{vae_forward.1} parent=1 // pred_region
      _
    $region73: #{vae_forward.1} parent=1 // pred_fallthru
      _
    %604 = vsyncpa [#allocation3], 1
    %605 = vsyncpa [#allocation5], 1
    %606 = vsyncpa [#allocation8], 1

</llo_original>
